<compile_context>
chip_gen: v7x
topology: tpu7x:2x2x1
jax: 0.10.0
libtpu: 0.0.40
codegen_flags: <defaults>
</compile_context>

<pallas_src>
import functools

import jax
import jax.numpy as jnp
from jax.experimental import pallas as pl
from jax.experimental.pallas import tpu as pltpu


def _sparse_attn_kernel(x_ref, w3_ref, b3_ref, o_ref, qkv_ref, *,
                        top_k, e_pad, tq, s_true):
    # x_ref  : (1, S_pad, E_pad)   full (padded) sequence for this batch
    # w3_ref : (E_pad, 3*E_pad)    fused [Wq | Wk | Wv], (in, out) layout
    # b3_ref : (1, 3*E_pad)        fused [bq | bk | bv]
    # o_ref  : (1, tq, E_pad)      output tile for this query tile
    # qkv_ref: (S_pad, 3*E_pad)    per-batch VMEM scratch holding Q|K|V
    qt = pl.program_id(1)

    @pl.when(qt == 0)
    def _():
        # Once per batch: fused full-sequence Q/K/V projection (single wide
        # MXU matmul, N = 3*E_pad fills the 256-wide MXU on v6e/v7x).
        qkv_ref[...] = (
            jnp.dot(x_ref[0], w3_ref[...], preferred_element_type=jnp.float32)
            + b3_ref[0])

    row0 = pl.multiple_of(qt * tq, 8)
    q = qkv_ref[pl.ds(row0, tq), 0:e_pad]                 # (tq, E_pad)
    k = qkv_ref[:, e_pad:2 * e_pad]                       # (S_pad, E_pad)

    # q @ k^T: contract the last dims of both operands (no explicit transpose).
    scores = jax.lax.dot_general(
        q, k, dimension_numbers=(((1,), (1,)), ((), ())),
        preferred_element_type=jnp.float32)               # (tq, S_pad)

    s_pad = scores.shape[-1]
    col_iota = jax.lax.broadcasted_iota(jnp.int32, scores.shape, 1)
    if s_pad > s_true:
        # Zero-padded key rows must never win the top-k selection.
        scores = jnp.where(col_iota < s_true, scores, -jnp.inf)

    # Exact top-k: k rounds of (row-max -> first occurrence -> mask), matching
    # torch.topk + scatter_ semantics. Only a boolean keep-mask is carried;
    # `sparse` is materialized once after the loop (one fewer live f32 buffer).
    work = scores
    keep = jnp.zeros(scores.shape, dtype=jnp.bool_)
    for _ in range(top_k):
        m = jnp.max(work, axis=-1, keepdims=True)                    # (tq, 1)
        pos = jnp.min(jnp.where(work == m, col_iota, s_pad),
                      axis=-1, keepdims=True)                        # first argmax
        one_hot = col_iota == pos
        keep = jnp.logical_or(keep, one_hot)
        work = jnp.where(one_hot, -jnp.inf, work)
    sparse = jnp.where(keep, scores, 0.0)

    # NOTE: the +1e-10 epsilon (inherited from the PyTorch reference) does not
    # protect against near-zero / negative top-k sums; documented hazard.
    denom = jnp.sum(sparse, axis=-1, keepdims=True) + 1e-10
    r = pl.reciprocal(denom, approx=True)
    r = r * (2.0 - denom * r)           # one Newton step -> near-exact 1/denom
    attn = sparse * r                                                # (tq, S_pad)

    # Value path in bf16 (MXU-native); selection already done, f32 accumulate.
    v = qkv_ref[:, 2 * e_pad:3 * e_pad]                              # (S_pad, E_pad)
    out = jnp.dot(attn.astype(jnp.bfloat16), v.astype(jnp.bfloat16),
                  preferred_element_type=jnp.float32)                # (tq, E_pad)
    o_ref[0] = out.astype(o_ref.dtype)


def _round_up(x, m):
    return (x + m - 1) // m * m


def sparse_attention(x, wq, bq, wk, bk, wv, bv, *, top_k=2, max_tq=256):
    """x: (B, S, E) float32. w*: (E, E) PyTorch Linear (out, in) layout. b*: (E,)."""
    B, S, E = x.shape
    E_pad = _round_up(E, 128)

    # Query-tile size (multiple of 8). If S doesn't divide, pad S up to a
    # multiple of tq instead of shrinking tq (padded keys are masked in-kernel,
    # padded query rows are sliced off the output).
    tq = max(8, (max_tq // 8) * 8)
    if S <= tq:
        tq = _round_up(S, 8)
        S_pad = tq
    else:
        S_pad = _round_up(S, tq)
    num_q_tiles = S_pad // tq

    # Lane-dense padding: E -> multiple of 128 (zero weight cols / bias entries,
    # so scores, top-k selection and the first E output columns are unchanged).
    x_pad = jnp.pad(x, ((0, 0), (0, S_pad - S), (0, E_pad - E)))

    def pad_w(w):                 # (out, in) -> padded (in, out)
        return jnp.pad(w.T, ((0, E_pad - E), (0, E_pad - E)))

    def pad_b(b):
        return jnp.pad(b, (0, E_pad - E))

    w3 = jnp.concatenate([pad_w(wq), pad_w(wk), pad_w(wv)], axis=1)   # (E_pad, 3E_pad)
    b3 = jnp.concatenate([pad_b(bq), pad_b(bk), pad_b(bv)]).reshape(1, 3 * E_pad)

    kern = functools.partial(_sparse_attn_kernel, top_k=top_k, e_pad=E_pad,
                             tq=tq, s_true=S)

    x_spec = pl.BlockSpec((1, S_pad, E_pad), lambda b, qt: (b, 0, 0))
    w3_spec = pl.BlockSpec((E_pad, 3 * E_pad), lambda b, qt: (0, 0))
    b3_spec = pl.BlockSpec((1, 3 * E_pad), lambda b, qt: (0, 0))
    out_spec = pl.BlockSpec((1, tq, E_pad), lambda b, qt: (b, qt, 0))

    # Generation-aware VMEM budget: ~96 MiB on v5e/v6e (128 MiB physical),
    # ~48 MiB on v7x (64 MiB physical).
    try:
        vmem_cap = pltpu.get_tpu_info().vmem_capacity_bytes
    except Exception:
        vmem_cap = 64 * 1024 * 1024
    vmem_limit = min(int(vmem_cap * 3) // 4, 100 * 1024 * 1024)

    out_pad = pl.pallas_call(
        kern,
        out_shape=jax.ShapeDtypeStruct((B, S_pad, E_pad), x.dtype),
        grid_spec=pltpu.PrefetchScalarGridSpec(
            num_scalar_prefetch=0,
            grid=(B, num_q_tiles),
            in_specs=[x_spec, w3_spec, b3_spec],
            out_specs=out_spec,
            scratch_shapes=[pltpu.VMEM((S_pad, 3 * E_pad), jnp.float32)],
        ),
        compiler_params=pltpu.CompilerParams(
            # Batch axis shardable across v7x's 2 TCs; qt must be sequential
            # because the QKV scratch is carried across query tiles.
            # (If B == 1 on v7x, split S into two macro-chunks in the wrapper
            #  to regain a >=2 parallel axis.)
            dimension_semantics=("parallel", "arbitrary"),
            vmem_limit_bytes=vmem_limit,
        ),
    )(x_pad, w3, b3)

    return out_pad[:, :S, :E]


def _reference(x, wq, bq, wk, bk, wv, bv, top_k=2):
    q = x @ wq.T + bq
    k = x @ wk.T + bk
    v = x @ wv.T + bv
    scores = jnp.einsum("bse,bte->bst", q, k)
    vals, idx = jax.lax.top_k(scores, top_k)
    sparse = jnp.zeros_like(scores)
    b_i = jnp.arange(scores.shape[0])[:, None, None]
    s_i = jnp.arange(scores.shape[1])[None, :, None]
    sparse = sparse.at[b_i, s_i, idx].set(vals)
    attn = sparse / (jnp.sum(sparse, axis=-1, keepdims=True) + 1e-10)
    return attn @ v


if __name__ == "__main__":
    B, S, E = 2, 16, 32
    TOP_K = 2

    key = jax.random.PRNGKey(0)
    kx, kwq, kbq, kwk, kbk, kwv, kbv = jax.random.split(key, 7)

    x = jax.random.normal(kx, (B, S, E), dtype=jnp.float32)
    # Synthetic "nn.Linear" parameters, PyTorch (out_features, in_features) layout.
    scale = 1.0 / jnp.sqrt(E)
    wq = jax.random.uniform(kwq, (E, E), jnp.float32, -scale, scale)
    bq = jax.random.uniform(kbq, (E,), jnp.float32, -scale, scale)
    wk = jax.random.uniform(kwk, (E, E), jnp.float32, -scale, scale)
    bk = jax.random.uniform(kbk, (E,), jnp.float32, -scale, scale)
    wv = jax.random.uniform(kwv, (E, E), jnp.float32, -scale, scale)
    bv = jax.random.uniform(kbv, (E,), jnp.float32, -scale, scale)

    # max_tq=8 -> grid (B=2, q_tiles=2): exercises the hoisted-projection /
    # scratch-carry path with multiple query tiles per batch.
    out = sparse_attention(x, wq, bq, wk, bk, wv, bv, top_k=TOP_K, max_tq=8)
    out = jax.block_until_ready(out)
    ref = _reference(x, wq, bq, wk, bk, wv, bv, top_k=TOP_K)
    assert out.shape == (B, S, E)
    assert jnp.allclose(out, ref, atol=2e-2, rtol=2e-2), "mismatch vs JAX reference"

    # Second config: S not a multiple of the tile -> padded-query rows and
    # masked padded-key columns are exercised.
    S2 = 12
    x2 = jax.random.normal(jax.random.PRNGKey(1), (B, S2, E), dtype=jnp.float32)
    out2 = sparse_attention(x2, wq, bq, wk, bk, wv, bv, top_k=TOP_K, max_tq=8)
    out2 = jax.block_until_ready(out2)
    ref2 = _reference(x2, wq, bq, wk, bk, wv, bv, top_k=TOP_K)
    assert out2.shape == (B, S2, E)
    assert jnp.allclose(out2, ref2, atol=2e-2, rtol=2e-2), "mismatch (padded S path)"

    print("KERNEL_OK")
</pallas_src>

<mosaic_0001>
module attributes {stable_mosaic.version = 11 : i64} {
  func.func @_sparse_attn_kernel(%arg0: i32, %arg1: i32, %arg2: memref<1x16x128xf32, #tpu.memory_space<vmem>>, %arg3: memref<128x384xf32, #tpu.memory_space<vmem>>, %arg4: memref<1x384xf32, #tpu.memory_space<vmem>>, %arg5: memref<1x8x128xf32, #tpu.memory_space<vmem>>, %arg6: memref<16x384xf32, #tpu.memory_space<vmem>>) attributes {dimension_semantics = [#tpu.dimension_semantics<parallel>, #tpu.dimension_semantics<arbitrary>], iteration_bounds = array<i64: 2, 2>, scalar_prefetch = 0 : i64, scratch_operands = 1 : i64, tpu.core_type = #tpu.core_type<tc>, window_params = [{transform_indices = @transform_0, window_bounds = array<i64: 1, 16, 128>}, {pipeline_mode = #tpu.pipeline_mode<synchronous>, transform_indices = @transform_1, window_bounds = array<i64: 128, 384>}, {pipeline_mode = #tpu.pipeline_mode<synchronous>, transform_indices = @transform_2, window_bounds = array<i64: 1, 384>}, {transform_indices = @transform_3, window_bounds = array<i64: 1, 8, 128>}]} {
    %c0_i32 = arith.constant 0 : i32
    %0 = arith.cmpi eq, %arg1, %c0_i32 : i32
    %1 = arith.extui %0 : i1 to i32
    %c0_i32_0 = arith.constant 0 : i32
    %2 = arith.cmpi ne, %1, %c0_i32_0 : i32
    scf.if %2 {
      %c0_17 = arith.constant 0 : index
      %c0_18 = arith.constant 0 : index
      %c0_19 = arith.constant 0 : index
      %55 = vector.load %arg2[%c0_17, %c0_18, %c0_19] : memref<1x16x128xf32, #tpu.memory_space<vmem>>, vector<1x16x128xf32>
      %56 = vector.shape_cast %55 : vector<1x16x128xf32> to vector<16x128xf32>
      %c0_20 = arith.constant 0 : index
      %c0_21 = arith.constant 0 : index
      %57 = vector.load %arg3[%c0_20, %c0_21] : memref<128x384xf32, #tpu.memory_space<vmem>>, vector<128x384xf32>
      %cst_22 = arith.constant dense<0.000000e+00> : vector<16x384xf32>
      %58 = tpu.matmul %56, %57, %cst_22 {dimension_numbers = #tpu.dot_dimension_numbers<[1], [0], [0], [1], [0, 0, 1, 1], [], []>} : vector<16x128xf32>, vector<128x384xf32>, vector<16x384xf32> -> vector<16x384xf32>
      %c0_23 = arith.constant 0 : index
      %c0_24 = arith.constant 0 : index
      %59 = vector.load %arg4[%c0_23, %c0_24] : memref<1x384xf32, #tpu.memory_space<vmem>>, vector<1x384xf32>
      %60 = vector.shape_cast %59 : vector<1x384xf32> to vector<384xf32>
      %61 = vector.shape_cast %60 : vector<384xf32> to vector<1x384xf32>
      %62 = vector.broadcast %61 : vector<1x384xf32> to vector<16x384xf32>
      %63 = arith.addf %58, %62 : vector<16x384xf32>
      %c0_25 = arith.constant 0 : index
      %c0_26 = arith.constant 0 : index
      %64 = vector.load %arg6[%c0_25, %c0_26] : memref<16x384xf32, #tpu.memory_space<vmem>>, vector<16x384xf32>
      tpu.vector_store %arg6[%c0_25, %c0_26], %63 {strides = array<i32>} : memref<16x384xf32, #tpu.memory_space<vmem>>, vector<16x384xf32>,
    } else {
    }
    %c8_i32 = arith.constant 8 : i32
    %3 = arith.muli %arg1, %c8_i32 : i32
    %4 = tpu.assume_multiple %3, 8 : i32
    %5 = arith.index_cast %4 : i32 to index
    %c0 = arith.constant 0 : index
    %6 = vector.load %arg6[%5, %c0] : memref<16x384xf32, #tpu.memory_space<vmem>>, vector<8x128xf32>
    %c0_1 = arith.constant 0 : index
    %c128 = arith.constant 128 : index
    %7 = vector.load %arg6[%c0_1, %c128] : memref<16x384xf32, #tpu.memory_space<vmem>>, vector<16x128xf32>
    %cst = arith.constant dense<0.000000e+00> : vector<8x16xf32>
    %8 = tpu.matmul %6, %7, %cst {dimension_numbers = #tpu.dot_dimension_numbers<[1], [1], [0], [0], [0, 0, 1, 0], [], []>} : vector<8x128xf32>, vector<16x128xf32>, vector<8x16xf32> -> vector<8x16xf32>
    %9 = tpu.iota {dimensions = array<i32: 1>} : vector<8x16xi32>
    %false = arith.constant false
    %10 = vector.broadcast %false : i1 to vector<8x16xi1>
    %cst_2 = arith.constant dense<0xFF800000> : vector<8xf32>
    %11 = vector.multi_reduction <maximumf>, %8, %cst_2 [1] : vector<8x16xf32> to vector<8xf32>
    %12 = vector.shape_cast %11 : vector<8xf32> to vector<8x1xf32>
    %13 = vector.broadcast %12 : vector<8x1xf32> to vector<8x16xf32>
    %14 = arith.cmpf oeq, %8, %13 : vector<8x16xf32>
    %c16_i32 = arith.constant 16 : i32
    %15 = vector.broadcast %c16_i32 : i32 to vector<8x16xi32>
    %16 = arith.select %14, %9, %15 : vector<8x16xi1>, vector<8x16xi32>
    %cst_3 = arith.constant dense<2147483647> : vector<8xi32>
    %17 = vector.multi_reduction <minsi>, %16, %cst_3 [1] : vector<8x16xi32> to vector<8xi32>
    %18 = vector.shape_cast %17 : vector<8xi32> to vector<8x1xi32>
    %19 = vector.broadcast %18 : vector<8x1xi32> to vector<8x16xi32>
    %20 = arith.cmpi eq, %9, %19 : vector<8x16xi32>
    %21 = arith.ori %10, %20 : vector<8x16xi1>
    %cst_4 = arith.constant 0xFF800000 : f32
    %22 = vector.broadcast %cst_4 : f32 to vector<8x16xf32>
    %23 = arith.select %20, %22, %8 : vector<8x16xi1>, vector<8x16xf32>
    %cst_5 = arith.constant dense<0xFF800000> : vector<8xf32>
    %24 = vector.multi_reduction <maximumf>, %23, %cst_5 [1] : vector<8x16xf32> to vector<8xf32>
    %25 = vector.shape_cast %24 : vector<8xf32> to vector<8x1xf32>
    %26 = vector.broadcast %25 : vector<8x1xf32> to vector<8x16xf32>
    %27 = arith.cmpf oeq, %23, %26 : vector<8x16xf32>
    %c16_i32_6 = arith.constant 16 : i32
    %28 = vector.broadcast %c16_i32_6 : i32 to vector<8x16xi32>
    %29 = arith.select %27, %9, %28 : vector<8x16xi1>, vector<8x16xi32>
    %cst_7 = arith.constant dense<2147483647> : vector<8xi32>
    %30 = vector.multi_reduction <minsi>, %29, %cst_7 [1] : vector<8x16xi32> to vector<8xi32>
    %31 = vector.shape_cast %30 : vector<8xi32> to vector<8x1xi32>
    %32 = vector.broadcast %31 : vector<8x1xi32> to vector<8x16xi32>
    %33 = arith.cmpi eq, %9, %32 : vector<8x16xi32>
    %34 = arith.ori %21, %33 : vector<8x16xi1>
    %cst_8 = arith.constant 0.000000e+00 : f32
    %35 = vector.broadcast %cst_8 : f32 to vector<8x16xf32>
    %36 = arith.select %34, %8, %35 : vector<8x16xi1>, vector<8x16xf32>
    %cst_9 = arith.constant dense<0.000000e+00> : vector<8xf32>
    %37 = vector.multi_reduction <add>, %36, %cst_9 [1] : vector<8x16xf32> to vector<8xf32>
    %38 = vector.shape_cast %37 : vector<8xf32> to vector<8x1xf32>
    %cst_10 = arith.constant 1.000000e-10 : f32
    %39 = vector.broadcast %cst_10 : f32 to vector<8x1xf32>
    %40 = arith.addf %38, %39 : vector<8x1xf32>
    %41 = tpu.reciprocal %40 {approx = true} : vector<8x1xf32> -> vector<8x1xf32>
    %42 = arith.mulf %40, %41 : vector<8x1xf32>
    %cst_11 = arith.constant 2.000000e+00 : f32
    %43 = vector.broadcast %cst_11 : f32 to vector<8x1xf32>
    %44 = arith.subf %43, %42 : vector<8x1xf32>
    %45 = arith.mulf %41, %44 : vector<8x1xf32>
    %46 = vector.broadcast %45 : vector<8x1xf32> to vector<8x16xf32>
    %47 = arith.mulf %36, %46 : vector<8x16xf32>
    %c0_12 = arith.constant 0 : index
    %c256 = arith.constant 256 : index
    %48 = vector.load %arg6[%c0_12, %c256] : memref<16x384xf32, #tpu.memory_space<vmem>>, vector<16x128xf32>
    %49 = arith.truncf %47 : vector<8x16xf32> to vector<8x16xbf16>
    %50 = arith.truncf %48 : vector<16x128xf32> to vector<16x128xbf16>
    %cst_13 = arith.constant dense<0.000000e+00> : vector<8x128xf32>
    %51 = tpu.matmul %49, %50, %cst_13 {dimension_numbers = #tpu.dot_dimension_numbers<[1], [0], [0], [1], [0, 0, 1, 1], [], []>} : vector<8x16xbf16>, vector<16x128xbf16>, vector<8x128xf32> -> vector<8x128xf32>
    %c0_14 = arith.constant 0 : index
    %c0_15 = arith.constant 0 : index
    %c0_16 = arith.constant 0 : index
    %52 = vector.load %arg5[%c0_14, %c0_15, %c0_16] : memref<1x8x128xf32, #tpu.memory_space<vmem>>, vector<1x8x128xf32>
    %53 = vector.shape_cast %52 : vector<1x8x128xf32> to vector<8x128xf32>
    %54 = vector.shape_cast %51 : vector<8x128xf32> to vector<1x8x128xf32>
    tpu.vector_store %arg5[%c0_14, %c0_15, %c0_16], %54 {strides = array<i32>} : memref<1x8x128xf32, #tpu.memory_space<vmem>>, vector<1x8x128xf32>,
    return
  }
  func.func @transform_0(%arg0: i32, %arg1: i32) -> (i32, i32, i32) {
    %c0_i32 = arith.constant 0 : i32
    %c0_i32_0 = arith.constant 0 : i32
    %c0_i32_1 = arith.constant 0 : i32
    return %arg0, %c0_i32, %c0_i32_0 : i32, i32, i32
  }
  func.func @transform_1(%arg0: i32, %arg1: i32) -> (i32, i32) {
    %c0_i32 = arith.constant 0 : i32
    %c0_i32_0 = arith.constant 0 : i32
    %c0_i32_1 = arith.constant 0 : i32
    return %c0_i32, %c0_i32_0 : i32, i32
  }
  func.func @transform_2(%arg0: i32, %arg1: i32) -> (i32, i32) {
    %c0_i32 = arith.constant 0 : i32
    %c0_i32_0 = arith.constant 0 : i32
    %c0_i32_1 = arith.constant 0 : i32
    return %c0_i32, %c0_i32_0 : i32, i32
  }
  func.func @transform_3(%arg0: i32, %arg1: i32) -> (i32, i32, i32) {
    %c0_i32 = arith.constant 0 : i32
    %c0_i32_0 = arith.constant 0 : i32
    return %arg0, %arg1, %c0_i32 : i32, i32, i32
  }
}

</mosaic_0001>

<llo_original>
// kernel: tpu_custom_call.1
$region0: #{tpu_custom_call.1}
  #allocation0 [shape = 'u32[]', space=smem, size = 0x4, offset = 0x4, fixed_abs, tag = 'smem constant byte address 0x4 - core index']
  #allocation1 [shape = 'u32[144,128]{1,0:T(1,128)}', space=vmem, size = 0x12000, scoped, tag = 'internal scratch']
  #allocation2 [shape = 'f32[16,384]{1,0:T(8,128)}', space=vmem, size = 0x6000, scoped, tag = 'scratch operand']
  %s0 = inlined_call_operand.hbm [shape: f32[2,16,128], index: 0, kind: input, shape index: {}]
  %s1 = inlined_call_operand.hbm [shape: f32[128,384], index: 1, kind: input, shape index: {}]
  %s2 = inlined_call_operand.vmem [shape: f32[1,384], index: 2, kind: input, shape index: {}]
  %s3 = inlined_call_operand.hbm [shape: f32[2,16,128], index: 3, kind: output, shape index: {}]
  %s4 = sld [smem:[#allocation0]]
  $region57: #{tpu_custom_call.1} parent=0
    _
  %s6 = ssub.s32 1, %s4
  %s7 = scalar_select 0, %s6, %s4
  $region1: #{tpu_custom_call.1} parent=0
    #allocation3 [shape = 'u8[16384]{0}', space=vmem, size = 0x4000, scoped, tag = 'input window, operand 0']
    #allocation4 [shape = 's32[2]{0}', space=sflag, size = 0x8, scoped, tag = 'scoped memory for tpu_custom_call.1']
    #allocation5 [shape = 's32[2]{0}', space=sflag, size = 0x8, scoped, tag = 'scoped memory for tpu_custom_call.1']
    #allocation6 [shape = 'u8[196608]{0}', space=vmem, size = 0x30000, scoped, tag = 'input window, operand 1, single buffered']
    #allocation7 [shape = 's32[1]{0}', space=sflag, size = 0x4, scoped, tag = 'scoped memory for tpu_custom_call.1']
    #allocation8 [shape = 'u8[8192]{0}', space=vmem, size = 0x2000, scoped, tag = 'output window, operand 0']
    %8 = vsyncpa [#allocation4], 0
    %s9 = scalar_lea.sflag [#allocation4], 1
    %10 = vsyncpa %s9, 0
    %11 = vsyncpa [#allocation7], 0
    %12 = vsyncpa [#allocation5], 0
    %s13 = scalar_lea.sflag [#allocation5], 1
    %14 = vsyncpa %s13, 0
    loop: start=0, step=1, limit=6
    $region2: #{tpu_custom_call.1} parent=1 // loop_pre_header
      _
    $region3: #{tpu_custom_call.1} parent=1 // loop_header
      %s16 = sphi 0, %s20
      %p17 = scmp.ge.s32.totalorder %s16, 6
      %s23 = sphi 0, %s35
      %s24 = sphi 0, %s31
      %s25 = sphi 0, %s23
      %s26 = sphi 0, %s24
      %s27 = sphi 0, %s25
      %s28 = sphi 0, %s26
      %s38 = sphi 0, %s40
      %s41 = sphi 0, %s38
      %s42 = sphi 0, %s41
      %s58 = sphi 0, %s42
      %s62 = sphi 0, %s62
      %s64 = sphi 0, %s62
      %s65 = sphi 0, %s64
      %s79 = sphi 0, %s65
      %s83 = sphi 0, %s83
      %s85 = sphi 0, %s83
      %s86 = sphi 0, %s85
      %s100 = sphi 0, %s86
      %s108 = sphi 0, %s110
      %s111 = sphi 0, %s108
      %s112 = sphi 0, %s111
      %s128 = sphi 0, %s112
    $region4: #{tpu_custom_call.1} parent=1 // loop_header_branch
      %19 = sbr.rel (%p17) target = $region8
    $region5: #{tpu_custom_call.1} parent=1 // loop_body
      %s21 = ssub.s32 %s16, 1
      %s22 = ssub.s32 %s16, 2
      %s29 = sadd.s32 1, %s24
      %p30 = scmp.ge.s32.totalorder %s29, 2
      %s31 = scalar_select %p30, 0, %s29
      %s32 = sadd.s32 1, %s23
      %s33 = scalar_select %p30, %s32, %s23
      %p34 = scmp.ge.s32.totalorder %s33, 2
      %s35 = scalar_select %p34, 0, %s33
      %s36 = ssub.s32 %s23, %s35
      %p37 = scmp.eq.s32.totalorder %s36, 0
      %s39 = sadd.s32 %s38, 1
      %s40 = scalar_select %p37, %s38, %s39
      %p43 = pneg %p37
      %p44 = scmp.eq.s32.totalorder %s16, 3
      %p45 = por %p43, %p44
      %p46 = scmp.ne.s32.totalorder %s38, %s41
      %p47 = scmp.eq.s32.totalorder %s16, 0
      %p48 = por %p46, %p47
      %p49 = scmp.ne.s32.totalorder %s38, %s41
      %p50 = scmp.eq.s32.totalorder %s21, 3
      %p51 = por %p49, %p50
      %p52 = scmp.ne.s32.totalorder %s41, %s42
      %p53 = scmp.eq.s32.totalorder %s21, 0
      %p54 = por %p52, %p53
      %p55 = scmp.ne.s32.totalorder %s41, %s42
      %p56 = scmp.eq.s32.totalorder %s22, 3
      %p57 = por %p55, %p56
      %p59 = scmp.ne.s32.totalorder %s42, %s58
      %p60 = scmp.eq.s32.totalorder %s22, 0
      %p61 = por %p59, %p60
      %s63 = sadd.s32 %s62, 1
      %p66 = scmp.eq.s32.totalorder %s16, 3
      %p67 = scmp.ne.s32.totalorder %s62, %s64
      %p68 = scmp.eq.s32.totalorder %s16, 0
      %p69 = por %p67, %p68
      %p70 = scmp.ne.s32.totalorder %s62, %s64
      %p71 = scmp.eq.s32.totalorder %s21, 3
      %p72 = por %p70, %p71
      %p73 = scmp.ne.s32.totalorder %s64, %s65
      %p74 = scmp.eq.s32.totalorder %s21, 0
      %p75 = por %p73, %p74
      %p76 = scmp.ne.s32.totalorder %s64, %s65
      %p77 = scmp.eq.s32.totalorder %s22, 3
      %p78 = por %p76, %p77
      %p80 = scmp.ne.s32.totalorder %s65, %s79
      %p81 = scmp.eq.s32.totalorder %s22, 0
      %p82 = por %p80, %p81
      %s84 = sadd.s32 %s83, 1
      %p87 = scmp.eq.s32.totalorder %s16, 3
      %p88 = scmp.ne.s32.totalorder %s83, %s85
      %p89 = scmp.eq.s32.totalorder %s16, 0
      %p90 = por %p88, %p89
      %p91 = scmp.ne.s32.totalorder %s83, %s85
      %p92 = scmp.eq.s32.totalorder %s21, 3
      %p93 = por %p91, %p92
      %p94 = scmp.ne.s32.totalorder %s85, %s86
      %p95 = scmp.eq.s32.totalorder %s21, 0
      %p96 = por %p94, %p95
      %p97 = scmp.ne.s32.totalorder %s85, %s86
      %p98 = scmp.eq.s32.totalorder %s22, 3
      %p99 = por %p97, %p98
      %p101 = scmp.ne.s32.totalorder %s86, %s100
      %p102 = scmp.eq.s32.totalorder %s22, 0
      %p103 = por %p101, %p102
      %s104 = ssub.s32 %s23, %s35
      %s105 = ssub.s32 %s24, %s31
      %s106 = sor.u32 %s104, %s105
      %p107 = scmp.eq.s32.totalorder %s106, 0
      %s109 = sadd.s32 %s108, 1
      %s110 = scalar_select %p107, %s108, %s109
      %p113 = pneg %p107
      %p114 = scmp.eq.s32.totalorder %s16, 3
      %p115 = por %p113, %p114
      %p116 = scmp.ne.s32.totalorder %s108, %s111
      %p117 = scmp.eq.s32.totalorder %s16, 0
      %p118 = por %p116, %p117
      %p119 = scmp.ne.s32.totalorder %s108, %s111
      %p120 = scmp.eq.s32.totalorder %s21, 3
      %p121 = por %p119, %p120
      %p122 = scmp.ne.s32.totalorder %s111, %s112
      %p123 = scmp.eq.s32.totalorder %s21, 0
      %p124 = por %p122, %p123
      %p125 = scmp.ne.s32.totalorder %s111, %s112
      %p126 = scmp.eq.s32.totalorder %s22, 3
      %p127 = por %p125, %p126
      %p129 = scmp.ne.s32.totalorder %s112, %s128
      %p130 = scmp.eq.s32.totalorder %s22, 0
      %p131 = por %p129, %p130
      %p132 = scmp.le.s32.totalorder 1, %s16
      %p133 = scmp.lt.s32.totalorder %s16, 5
      %p134 = pnand %p132, %p133
      %p135 = pneg %p134
      // Predicated region
      $region9: #{tpu_custom_call.1} parent=5 // pred_check
        _
      $region10: #{tpu_custom_call.1} parent=5 // pred_check_branch
        %137 = sbr.rel (%p134) target = $region12
      $region11: #{tpu_custom_call.1} parent=5 // pred_region
        %s138 = ssub.s32 %s16, 1
        // Predicated region
        $region13: #{tpu_custom_call.1} parent=11 // pred_check
          %p139 = pneg %p75
        $region14: #{tpu_custom_call.1} parent=11 // pred_check_branch
          %141 = sbr.rel (%p139) target = $region16
        $region15: #{tpu_custom_call.1} parent=11 // pred_region
          %s143 = ssub.s32 6144, 6144
          %144 = vsyncadd [#allocation7], %s143
          %s145 = sshll.u32 [#allocation6], 4
          %s146 = int_to_ptr.vmem [resolvable:$true] %s145
          %151 = dma.hbm_to_vmem [thread:$0]  %s1, 6144, %s146, [#allocation7], 384, 384, 24
        $region16: #{tpu_custom_call.1} parent=11 // pred_fallthru
          _
        // Predicated region
        $region17: #{tpu_custom_call.1} parent=11 // pred_check
          %p152 = pneg %p96
        $region18: #{tpu_custom_call.1} parent=11 // pred_check_branch
          %154 = sbr.rel (%p152) target = $region20
        $region19: #{tpu_custom_call.1} parent=11 // pred_region
          _
        $region20: #{tpu_custom_call.1} parent=11 // pred_fallthru
          _
      $region12: #{tpu_custom_call.1} parent=5 // pred_fallthru
        _
      %p155 = scmp.lt.s32.totalorder %s16, 4
      // Predicated region
      $region21: #{tpu_custom_call.1} parent=5 // pred_check
        %p156 = pneg %p155
      $region22: #{tpu_custom_call.1} parent=5 // pred_check_branch
        %158 = sbr.rel (%p156) target = $region24
      $region23: #{tpu_custom_call.1} parent=5 // pred_region
        // Predicated region
        $region25: #{tpu_custom_call.1} parent=23 // pred_check
          %p159 = pneg %p48
        $region26: #{tpu_custom_call.1} parent=23 // pred_check_branch
          %161 = sbr.rel (%p159) target = $region28
        $region27: #{tpu_custom_call.1} parent=23 // pred_region
          %s162 = sand.u32 %s38, 1
          %s163 = scalar_lea.sflag [#allocation4], %s162
          %s164 = sand.u32 %s38, 1
          %s165 = smul.addr %s164, 16
          %s166 = scalar_lea.vmem [#allocation3], %s165
          %s168 = ssub.s32 256, 256
          %169 = vsyncadd %s163, %s168
          %s170 = smul.addr %s23, 2
          %s171 = smul.addr %s170, 128
          %s172 = scalar_lea.hbm %s0, %s171
          %s173 = sshll.u32 %s166, 4
          %s174 = int_to_ptr.vmem [resolvable:$true] %s173
          %179 = dma.hbm_to_vmem [thread:$0]  %s172, 256, %s174, %s163, 128, 128, 8
        $region28: #{tpu_custom_call.1} parent=23 // pred_fallthru
          _
      $region24: #{tpu_custom_call.1} parent=5 // pred_fallthru
        _
      %p180 = scmp.le.s32.totalorder 1, %s16
      %p181 = scmp.lt.s32.totalorder %s16, 5
      %p182 = pnand %p180, %p181
      %p183 = pneg %p182
      // Predicated region
      $region29: #{tpu_custom_call.1} parent=5 // pred_check
        _
      $region30: #{tpu_custom_call.1} parent=5 // pred_check_branch
        %185 = sbr.rel (%p182) target = $region32
      $region31: #{tpu_custom_call.1} parent=5 // pred_region
        %s186 = ssub.s32 %s16, 1
        %s187 = sand.u32 %s41, 1
        %s188 = scalar_lea.sflag [#allocation4], %s187
        %s189 = sand.u32 %s41, 1
        %s190 = smul.addr %s189, 16
        %s191 = scalar_lea.vmem [#allocation3], %s190
        // Predicated region
        $region33: #{tpu_custom_call.1} parent=31 // pred_check
          %p192 = pneg %p54
        $region34: #{tpu_custom_call.1} parent=31 // pred_check_branch
          %194 = sbr.rel (%p192) target = $region36
        $region35: #{tpu_custom_call.1} parent=31 // pred_region
          %195 = dma.done %s188, 256
        $region36: #{tpu_custom_call.1} parent=31 // pred_fallthru
          _
        // Predicated region
        $region37: #{tpu_custom_call.1} parent=31 // pred_check
          %p196 = pneg %p75
        $region38: #{tpu_custom_call.1} parent=31 // pred_check_branch
          %198 = sbr.rel (%p196) target = $region40
        $region39: #{tpu_custom_call.1} parent=31 // pred_region
          %199 = dma.done [#allocation7], 6144
        $region40: #{tpu_custom_call.1} parent=31 // pred_fallthru
          _
        %s200 = sand.u32 %s41, 1
        %s201 = scalar_lea.sflag [#allocation4], %s200
        %s202 = sand.u32 %s41, 1
        %s203 = smul.addr %s202, 16
        %s204 = scalar_lea.vmem [#allocation3], %s203
        %p205 = pneg %p54
        %p206 = pneg %p51
        %p207 = pneg %p75
        %p208 = pneg %p72
        %p209 = pneg %p96
        %p210 = pneg %p93
        %p211 = pneg %p124
        %p212 = pneg %p121
        %s213 = sand.u32 %s111, 1
        %s214 = scalar_lea.sflag [#allocation5], %s213
        %s215 = sand.u32 %s111, 1
        %s216 = smul.addr %s215, 8
        %s217 = scalar_lea.vmem [#allocation8], %s216
        %p219 = scmp.eq.s32.totalorder %s26, 0
        // Predicated region
        $region41: #{tpu_custom_call.1} parent=31 // pred_check
          %p220 = pneg %p219
        $region42: #{tpu_custom_call.1} parent=31 // pred_check_branch
          %222 = sbr.rel (%p220) target = $region44
        $region43: #{tpu_custom_call.1} parent=31 // pred_region
          %v223 = vld [vmem:[%s191] sm:$0xff]
          %v224 = vld [vmem:[%s191 + $0x8] sm:$0xff]
          %v225 = vld [vmem:[#allocation6] sm:$0xff]
          %v226 = vld [vmem:[#allocation6 + $0x8] sm:$0xff]
          %v227 = vld [vmem:[#allocation6 + $0x10] sm:$0xff]
          %v228 = vld [vmem:[#allocation6 + $0x18] sm:$0xff]
          %v229 = vld [vmem:[#allocation6 + $0x20] sm:$0xff]
          %v230 = vld [vmem:[#allocation6 + $0x28] sm:$0xff]
          %v231 = vld [vmem:[#allocation6 + $0x30] sm:$0xff]
          %v232 = vld [vmem:[#allocation6 + $0x38] sm:$0xff]
          %v233 = vld [vmem:[#allocation6 + $0x40] sm:$0xff]
          %v234 = vld [vmem:[#allocation6 + $0x48] sm:$0xff]
          %v235 = vld [vmem:[#allocation6 + $0x50] sm:$0xff]
          %v236 = vld [vmem:[#allocation6 + $0x58] sm:$0xff]
          %v237 = vld [vmem:[#allocation6 + $0x60] sm:$0xff]
          %v238 = vld [vmem:[#allocation6 + $0x68] sm:$0xff]
          %v239 = vld [vmem:[#allocation6 + $0x70] sm:$0xff]
          %v240 = vld [vmem:[#allocation6 + $0x78] sm:$0xff]
          %v241 = vld [vmem:[#allocation6 + $0x80] sm:$0xff]
          %v242 = vld [vmem:[#allocation6 + $0x88] sm:$0xff]
          %v243 = vld [vmem:[#allocation6 + $0x90] sm:$0xff]
          %v244 = vld [vmem:[#allocation6 + $0x98] sm:$0xff]
          %v245 = vld [vmem:[#allocation6 + $0xa0] sm:$0xff]
          %v246 = vld [vmem:[#allocation6 + $0xa8] sm:$0xff]
          %v247 = vld [vmem:[#allocation6 + $0xb0] sm:$0xff]
          %v248 = vld [vmem:[#allocation6 + $0xb8] sm:$0xff]
          %v249 = vld [vmem:[#allocation6 + $0xc0] sm:$0xff]
          %v250 = vld [vmem:[#allocation6 + $0xc8] sm:$0xff]
          %v251 = vld [vmem:[#allocation6 + $0xd0] sm:$0xff]
          %v252 = vld [vmem:[#allocation6 + $0xd8] sm:$0xff]
          %v253 = vld [vmem:[#allocation6 + $0xe0] sm:$0xff]
          %v254 = vld [vmem:[#allocation6 + $0xe8] sm:$0xff]
          %v255 = vld [vmem:[#allocation6 + $0xf0] sm:$0xff]
          %v256 = vld [vmem:[#allocation6 + $0xf8] sm:$0xff]
          %v257 = vld [vmem:[#allocation6 + $0x100] sm:$0xff]
          %v258 = vld [vmem:[#allocation6 + $0x108] sm:$0xff]
          %v259 = vld [vmem:[#allocation6 + $0x110] sm:$0xff]
          %v260 = vld [vmem:[#allocation6 + $0x118] sm:$0xff]
          %v261 = vld [vmem:[#allocation6 + $0x120] sm:$0xff]
          %v262 = vld [vmem:[#allocation6 + $0x128] sm:$0xff]
          %v263 = vld [vmem:[#allocation6 + $0x130] sm:$0xff]
          %v264 = vld [vmem:[#allocation6 + $0x138] sm:$0xff]
          %v265 = vld [vmem:[#allocation6 + $0x140] sm:$0xff]
          %v266 = vld [vmem:[#allocation6 + $0x148] sm:$0xff]
          %v267 = vld [vmem:[#allocation6 + $0x150] sm:$0xff]
          %v268 = vld [vmem:[#allocation6 + $0x158] sm:$0xff]
          %v269 = vld [vmem:[#allocation6 + $0x160] sm:$0xff]
          %v270 = vld [vmem:[#allocation6 + $0x168] sm:$0xff]
          %v271 = vld [vmem:[#allocation6 + $0x170] sm:$0xff]
          %v272 = vld [vmem:[#allocation6 + $0x178] sm:$0xff]
          %v273 = vld [vmem:[%s2] sm:$0x7]
          %v275 = vlaneseq
          %v276 = vshrl.u32 %v275, 7
          %v277 = vsub.s32 0, %v276
          %v278 = vrot.slane %v273, %v277
          %v279 = vlaneseq
          %v280 = vshrl.u32 %v279, 7
          %v281 = vsub.s32 1, %v280
          %v282 = vrot.slane %v273, %v281
          %v283 = vlaneseq
          %v284 = vshrl.u32 %v283, 7
          %v285 = vsub.s32 2, %v284
          %v286 = vrot.slane %v273, %v285
          %290 = vmatprep.subr.mxu0 %v226
          %291 = vmatpush1.msra.mxu0 %v225
          %292 = vmatprep.subr.mxu0 %v229
          %293 = vmatpush1.msra.mxu0 %v228
          %294 = vmatprep.subr.mxu0 %v232
          %295 = vmatpush1.msra.mxu0 %v231
          %296 = vmatprep.subr.mxu0 %v235
          %297 = vmatpush1.msra.mxu0 %v234
          %298 = vmatprep.subr.mxu0 %v238
          %299 = vmatpush1.msra.mxu0 %v237
          %300 = vmatprep.subr.mxu0 %v241
          %301 = vmatpush1.msra.mxu0 %v240
          %302 = vmatprep.subr.mxu0 %v244
          %303 = vmatpush1.msra.mxu0 %v243
          %304 = vmatprep.subr.mxu0 %v247
          %305 = vmatpush1.msra.mxu0 %v246
          %306 = vmatprep.subr.mxu0 %v250
          %307 = vmatpush1.msra.mxu0 %v249
          %308 = vmatprep.subr.mxu0 %v253
          %309 = vmatpush1.msra.mxu0 %v252
          %310 = vmatprep.subr.mxu0 %v256
          %311 = vmatpush1.msra.mxu0 %v255
          %312 = vmatprep.subr.mxu0 %v259
          %313 = vmatpush1.msra.mxu0 %v258
          %314 = vmatprep.subr.mxu0 %v262
          %315 = vmatpush1.msra.mxu0 %v261
          %316 = vmatprep.subr.mxu0 %v265
          %317 = vmatpush1.msra.mxu0 %v264
          %318 = vmatprep.subr.mxu0 %v268
          %319 = vmatpush1.msra.mxu0 %v267
          %320 = vmatprep.subr.mxu0 %v271
          %321 = vmatpush1.msra.mxu0 %v270
          %322 = vmatprep.subr.mxu0 0.0
          %323 = vmatpush1.msra.mxu0 0.0
          %324 = vmatprep.subr.mxu0 0.0
          %325 = vmatpush1.msra.mxu0 0.0
          %326 = vmatprep.subr.mxu0 0.0
          %327 = vmatpush1.msra.mxu0 0.0
          %328 = vmatprep.subr.mxu0 0.0
          %329 = vmatpush1.msra.mxu0 0.0
          %330 = vmatprep.subr.mxu0 0.0
          %331 = vmatpush1.msra.mxu0 0.0
          %332 = vmatprep.subr.mxu0 0.0
          %333 = vmatpush1.msra.mxu0 0.0
          %334 = vmatprep.subr.mxu0 0.0
          %335 = vmatpush1.msra.mxu0 0.0
          %336 = vmatprep.subr.mxu0 0.0
          %337 = vmatpush1.msra.mxu0 0.0
          %338 = vmatprep.subr.mxu0 0.0
          %339 = vmatpush1.msra.mxu0 0.0
          %340 = vmatprep.subr.mxu0 0.0
          %341 = vmatpush1.msra.mxu0 0.0
          %342 = vmatprep.subr.mxu0 0.0
          %343 = vmatpush1.msra.mxu0 0.0
          %344 = vmatprep.subr.mxu0 0.0
          %345 = vmatpush1.msra.mxu0 0.0
          %346 = vmatprep.subr.mxu0 0.0
          %347 = vmatpush1.msra.mxu0 0.0
          %348 = vmatprep.subr.mxu0 0.0
          %349 = vmatpush1.msra.mxu0 0.0
          %350 = vmatprep.subr.mxu0 0.0
          %351 = vmatpush1.msra.mxu0 0.0
          %352 = vmatprep.subr.mxu0 0.0
          %353 = vmatpush1.msra.mxu0 0.0
          %354 = vmatprep.mubr.f32.mxu0 0.0
          %355 = vmatmul.mubr.f32.gmra.mrb[0].mxu0 %v223
          %v356 = vpop.f32.mrb[0].mxu0
          %v357 = vadd.f32 %v278, %v356
          %v358 = vpop.f32.mrb[0].mxu0
          %v359 = vadd.f32 %v282, %v358
          %360 = vmatprep.mubr.f32.mxu0 0.0
          %361 = vmatmul.mubr.f32.gmra.mrb[0].mxu0 %v224
          %v362 = vpop.f32.mrb[0].mxu0
          %v363 = vadd.f32 %v278, %v362
          %v364 = vpop.f32.mrb[0].mxu0
          %v365 = vadd.f32 %v282, %v364
          %366 = vdwg.mxu0
          %367 = vmatprep.subr.mxu0 0.0
          %368 = vmatpush1.msra.mxu0 %v227
          %369 = vmatprep.subr.mxu0 0.0
          %370 = vmatpush1.msra.mxu0 %v230
          %371 = vmatprep.subr.mxu0 0.0
          %372 = vmatpush1.msra.mxu0 %v233
          %373 = vmatprep.subr.mxu0 0.0
          %374 = vmatpush1.msra.mxu0 %v236
          %375 = vmatprep.subr.mxu0 0.0
          %376 = vmatpush1.msra.mxu0 %v239
          %377 = vmatprep.subr.mxu0 0.0
          %378 = vmatpush1.msra.mxu0 %v242
          %379 = vmatprep.subr.mxu0 0.0
          %380 = vmatpush1.msra.mxu0 %v245
          %381 = vmatprep.subr.mxu0 0.0
          %382 = vmatpush1.msra.mxu0 %v248
          %383 = vmatprep.subr.mxu0 0.0
          %384 = vmatpush1.msra.mxu0 %v251
          %385 = vmatprep.subr.mxu0 0.0
          %386 = vmatpush1.msra.mxu0 %v254
          %387 = vmatprep.subr.mxu0 0.0
          %388 = vmatpush1.msra.mxu0 %v257
          %389 = vmatprep.subr.mxu0 0.0
          %390 = vmatpush1.msra.mxu0 %v260
          %391 = vmatprep.subr.mxu0 0.0
          %392 = vmatpush1.msra.mxu0 %v263
          %393 = vmatprep.subr.mxu0 0.0
          %394 = vmatpush1.msra.mxu0 %v266
          %395 = vmatprep.subr.mxu0 0.0
          %396 = vmatpush1.msra.mxu0 %v269
          %397 = vmatprep.subr.mxu0 0.0
          %398 = vmatpush1.msra.mxu0 %v272
          %399 = vmatprep.subr.mxu0 0.0
          %400 = vmatpush1.msra.mxu0 0.0
          %401 = vmatprep.subr.mxu0 0.0
          %402 = vmatpush1.msra.mxu0 0.0
          %403 = vmatprep.subr.mxu0 0.0
          %404 = vmatpush1.msra.mxu0 0.0
          %405 = vmatprep.subr.mxu0 0.0
          %406 = vmatpush1.msra.mxu0 0.0
          %407 = vmatprep.subr.mxu0 0.0
          %408 = vmatpush1.msra.mxu0 0.0
          %409 = vmatprep.subr.mxu0 0.0
          %410 = vmatpush1.msra.mxu0 0.0
          %411 = vmatprep.subr.mxu0 0.0
          %412 = vmatpush1.msra.mxu0 0.0
          %413 = vmatprep.subr.mxu0 0.0
          %414 = vmatpush1.msra.mxu0 0.0
          %415 = vmatprep.subr.mxu0 0.0
          %416 = vmatpush1.msra.mxu0 0.0
          %417 = vmatprep.subr.mxu0 0.0
          %418 = vmatpush1.msra.mxu0 0.0
          %419 = vmatprep.subr.mxu0 0.0
          %420 = vmatpush1.msra.mxu0 0.0
          %421 = vmatprep.subr.mxu0 0.0
          %422 = vmatpush1.msra.mxu0 0.0
          %423 = vmatprep.subr.mxu0 0.0
          %424 = vmatpush1.msra.mxu0 0.0
          %425 = vmatprep.subr.mxu0 0.0
          %426 = vmatpush1.msra.mxu0 0.0
          %427 = vmatprep.subr.mxu0 0.0
          %428 = vmatpush1.msra.mxu0 0.0
          %429 = vmatprep.subr.mxu0 0.0
          %430 = vmatpush1.msra.mxu0 0.0
          %431 = vmatprep.mubr.f32.mxu0 0.0
          %432 = vmatmul.mubr.f32.gmra.mrb[0].mxu0 %v223
          %v433 = vpop.f32.mrb[0].mxu0
          %v434 = vadd.f32 %v286, %v433
          %v435 = vpop.f32.mrb[0].mxu0
          %436 = vmatprep.mubr.f32.mxu0 0.0
          %437 = vmatmul.mubr.f32.gmra.mrb[0].mxu0 %v224
          %v438 = vpop.f32.mrb[0].mxu0
          %v439 = vadd.f32 %v286, %v438
          %v440 = vpop.f32.mrb[0].mxu0
          %441 = vdwg.mxu0
          %442 = vst [vmem:[#allocation2] sm:$0xff] %v357
          %443 = vst [vmem:[#allocation2 + $0x8] sm:$0xff] %v359
          %444 = vst [vmem:[#allocation2 + $0x10] sm:$0xff] %v434
          %445 = vst [vmem:[#allocation2 + $0x18] sm:$0xff] %v363
          %446 = vst [vmem:[#allocation2 + $0x20] sm:$0xff] %v365
          %447 = vst [vmem:[#allocation2 + $0x28] sm:$0xff] %v439
        $region44: #{tpu_custom_call.1} parent=31 // pred_fallthru
          _
        %s448 = smul.u32 %s26, 8
        %s449 = sshra.s32 %s448, 3
        %s450 = sand.u32 %s448, 7
        %s451 = smul.u32 %s449, 3
        %s452 = smul.addr %s451, 8
        %s453 = scalar_lea.vmem [#allocation2], %s452
        %v454 = vld [vmem:[%s453] sm:$0xff]
        %v455 = vld [vmem:[#allocation2 + $0x8] sm:$0xff]
        %v456 = vld [vmem:[#allocation2 + $0x20] sm:$0xff]
        %457 = vmatprep.subr.mxu0 0.0
        %458 = vmatpush1.xpose.msra.mxu0 %v455
        %459 = vmatprep.subr.mxu0 0.0
        %460 = vmatpush1.xpose.msra.mxu0 %v456
        %461 = vmatprep.subr.mxu0 0.0
        %462 = vmatpush1.xpose.msra.mxu0 0.0
        %463 = vmatprep.subr.mxu0 0.0
        %464 = vmatpush1.xpose.msra.mxu0 0.0
        %465 = vmatprep.subr.mxu0 0.0
        %466 = vmatpush1.xpose.msra.mxu0 0.0
        %467 = vmatprep.subr.mxu0 0.0
        %468 = vmatpush1.xpose.msra.mxu0 0.0
        %469 = vmatprep.subr.mxu0 0.0
        %470 = vmatpush1.xpose.msra.mxu0 0.0
        %471 = vmatprep.subr.mxu0 0.0
        %472 = vmatpush1.xpose.msra.mxu0 0.0
        %473 = vmatprep.subr.mxu0 0.0
        %474 = vmatpush1.xpose.msra.mxu0 0.0
        %475 = vmatprep.subr.mxu0 0.0
        %476 = vmatpush1.xpose.msra.mxu0 0.0
        %477 = vmatprep.subr.mxu0 0.0
        %478 = vmatpush1.xpose.msra.mxu0 0.0
        %479 = vmatprep.subr.mxu0 0.0
        %480 = vmatpush1.xpose.msra.mxu0 0.0
        %481 = vmatprep.subr.mxu0 0.0
        %482 = vmatpush1.xpose.msra.mxu0 0.0
        %483 = vmatprep.subr.mxu0 0.0
        %484 = vmatpush1.xpose.msra.mxu0 0.0
        %485 = vmatprep.subr.mxu0 0.0
        %486 = vmatpush1.xpose.msra.mxu0 0.0
        %487 = vmatprep.subr.mxu0 0.0
        %488 = vmatpush1.xpose.msra.mxu0 0.0
        %489 = vmatprep.subr.mxu0 0.0
        %490 = vmatpush1.xpose.msra.mxu0 0.0
        %491 = vmatprep.subr.mxu0 0.0
        %492 = vmatpush1.xpose.msra.mxu0 0.0
        %493 = vmatprep.subr.mxu0 0.0
        %494 = vmatpush1.xpose.msra.mxu0 0.0
        %495 = vmatprep.subr.mxu0 0.0
        %496 = vmatpush1.xpose.msra.mxu0 0.0
        %497 = vmatprep.subr.mxu0 0.0
        %498 = vmatpush1.xpose.msra.mxu0 0.0
        %499 = vmatprep.subr.mxu0 0.0
        %500 = vmatpush1.xpose.msra.mxu0 0.0
        %501 = vmatprep.subr.mxu0 0.0
        %502 = vmatpush1.xpose.msra.mxu0 0.0
        %503 = vmatprep.subr.mxu0 0.0
        %504 = vmatpush1.xpose.msra.mxu0 0.0
        %505 = vmatprep.subr.mxu0 0.0
        %506 = vmatpush1.xpose.msra.mxu0 0.0
        %507 = vmatprep.subr.mxu0 0.0
        %508 = vmatpush1.xpose.msra.mxu0 0.0
        %509 = vmatprep.subr.mxu0 0.0
        %510 = vmatpush1.xpose.msra.mxu0 0.0
        %511 = vmatprep.subr.mxu0 0.0
        %512 = vmatpush1.xpose.msra.mxu0 0.0
        %513 = vmatprep.subr.mxu0 0.0
        %514 = vmatpush1.xpose.msra.mxu0 0.0
        %515 = vmatprep.subr.mxu0 0.0
        %516 = vmatpush1.xpose.msra.mxu0 0.0
        %517 = vmatprep.subr.mxu0 0.0
        %518 = vmatpush1.xpose.msra.mxu0 0.0
        %519 = vmatprep.subr.mxu0 0.0
        %520 = vmatpush1.xpose.msra.mxu0 0.0
        %521 = vmatprep.mubr.f32.mxu0 0.0
        %522 = vmatmul.mubr.f32.gmra.mrb[0].mxu0 %v454
        %v523 = vpop.f32.mrb[0].mxu0
        %v524 = vadd.f32 0.0, %v523
        %v525 = vpop.f32.mrb[0].mxu0
        %526 = vdwg.mxu0
        %v527 = vlaneseq
        %v528 = vand.u32 %v527, 127
        %vm529 = vcmask 130048
        %v530 = vsel %vm529, %v524, -inf
        %531 = vmax.xlane.f32.xlu0 %v530
        %v532 = vpop.xlane.xlu0 %531
        %vm533 = vcmp.eq.f32.partialorder %v524, %v532
        %v534 = vsel %vm533, %v528, 16
        %v535 = vsel %vm529, %v534, 2147483647
        %v536 = vand.u32 %v535, 65535
        %v537 = vshra.s32 %v535, 16
        %v538 = vcvt.s32.f32 %v536
        %v539 = vcvt.s32.f32 %v537
        %540 = vmin.xlane.f32.xlu0 %v539
        %v541 = vpop.xlane.xlu0 %540
        %vm542 = vcmp.eq.f32.partialorder %v539, %v541
        %v543 = vsel %vm542, %v538, inf
        %544 = vmin.xlane.f32.xlu0 %v543
        %v545 = vpop.xlane.xlu0 %544
        %v546 = vcvt.f32.s32 %v545
        %v547 = vcvt.f32.s32 %v541
        %v548 = vshll.u32 %v547, 16
        %v549 = vadd.s32 %v548, %v546
        %vm550 = vcmp.eq.s32.totalorder %v528, %v549
        %v551 = vsel %vm550, -inf, %v524
        %v552 = vsel %vm529, %v551, -inf
        %553 = vmax.xlane.f32.xlu0 %v552
        %v554 = vpop.xlane.xlu0 %553
        %vm555 = vcmp.eq.f32.partialorder %v551, %v554
        %v556 = vsel %vm555, %v528, 16
        %v557 = vsel %vm529, %v556, 2147483647
        %v558 = vand.u32 %v557, 65535
        %v559 = vshra.s32 %v557, 16
        %v560 = vcvt.s32.f32 %v558
        %v561 = vcvt.s32.f32 %v559
        %562 = vmin.xlane.f32.xlu0 %v561
        %v563 = vpop.xlane.xlu0 %562
        %vm564 = vcmp.eq.f32.partialorder %v561, %v563
        %v565 = vsel %vm564, %v560, inf
        %566 = vmin.xlane.f32.xlu0 %v565
        %v567 = vpop.xlane.xlu0 %566
        %v568 = vcvt.f32.s32 %v567
        %v569 = vcvt.f32.s32 %v563
        %v570 = vshll.u32 %v569, 16
        %v571 = vadd.s32 %v570, %v568
        %vm572 = vcmp.eq.s32.totalorder %v528, %v571
        %vm573 = vmor %vm550, %vm572
        %v574 = vsel %vm573, %v524, 0.0
        %v575 = vsel %vm529, %v574, 0.0
        %576 = vadd.xlane.f32.xlu0 %v575
        %v577 = vpop.xlane.xlu0 %576
        %v578 = vadd.f32 %v577, 1e-10
        %v579 = vrcp.pop %v578
        %v580 = vmul.f32 %v578, %v579
        %v581 = vsub.f32 2.0, %v580
        %v582 = vmul.f32 %v579, %v581
        %v583 = vmul.f32 %v574, %v582
        %v584 = vld [vmem:[#allocation2 + $0x10] sm:$0xff]
        %v585 = vld [vmem:[#allocation2 + $0x28] sm:$0xff]
        %v586 = vpack.c.bf16 %v583, %v583
        %v587 = vpack.c.bf16 %v585, %v584
        %v589 = vsel %vm529, %v586, 0
        %591 = vmatprep.subr.bf16.mxu0 0
        %592 = vmatpush1.bf16.msra.mxu0 %v587
        %593 = vmatprep.subr.bf16.mxu0 0
        %594 = vmatpush1.bf16.msra.mxu0 0
        %595 = vmatprep.subr.bf16.mxu0 0
        %596 = vmatpush1.bf16.msra.mxu0 0
        %597 = vmatprep.subr.bf16.mxu0 0
        %598 = vmatpush1.bf16.msra.mxu0 0
        %599 = vmatprep.subr.bf16.mxu0 0
        %600 = vmatpush1.bf16.msra.mxu0 0
        %601 = vmatprep.subr.bf16.mxu0 0
        %602 = vmatpush1.bf16.msra.mxu0 0
        %603 = vmatprep.subr.bf16.mxu0 0
        %604 = vmatpush1.bf16.msra.mxu0 0
        %605 = vmatprep.subr.bf16.mxu0 0
        %606 = vmatpush1.bf16.msra.mxu0 0
        %607 = vmatprep.subr.bf16.mxu0 0
        %608 = vmatpush1.bf16.msra.mxu0 0
        %609 = vmatprep.subr.bf16.mxu0 0
        %610 = vmatpush1.bf16.msra.mxu0 0
        %611 = vmatprep.subr.bf16.mxu0 0
        %612 = vmatpush1.bf16.msra.mxu0 0
        %613 = vmatprep.subr.bf16.mxu0 0
        %614 = vmatpush1.bf16.msra.mxu0 0
        %615 = vmatprep.subr.bf16.mxu0 0
        %616 = vmatpush1.bf16.msra.mxu0 0
        %617 = vmatprep.subr.bf16.mxu0 0
        %618 = vmatpush1.bf16.msra.mxu0 0
        %619 = vmatprep.subr.bf16.mxu0 0
        %620 = vmatpush1.bf16.msra.mxu0 0
        %621 = vmatprep.subr.bf16.mxu0 0
        %622 = vmatpush1.bf16.msra.mxu0 0
        %623 = vmatprep.mubr.bf16.mxu0 0
        %624 = vmatmul.mubr.bf16.gmra.mrb[0].mxu0 %v589
        %v625 = vpop.f32.mrb[0].mxu0
        %v626 = vadd.f32 0.0, %v625
        %v627 = vpop.f32.mrb[0].mxu0
        %v628 = vpop.f32.mrb[0].mxu0
        %v629 = vpop.f32.mrb[0].mxu0
        %630 = vdwg.mxu0
        %631 = vst [vmem:[%s217] sm:$0xff] %v626
        %s632 = sand.u32 %s111, 1
        %s633 = scalar_lea.sflag [#allocation5], %s632
        %s634 = sand.u32 %s111, 1
        %s635 = smul.addr %s634, 8
        %s636 = scalar_lea.vmem [#allocation8], %s635
        // Predicated region
        $region45: #{tpu_custom_call.1} parent=31 // pred_check
          %p637 = pneg %p121
        $region46: #{tpu_custom_call.1} parent=31 // pred_check_branch
          %639 = sbr.rel (%p637) target = $region48
        $region47: #{tpu_custom_call.1} parent=31 // pred_region
          %s641 = ssub.s32 128, 128
          %642 = vsyncadd %s633, %s641
          %s643 = smul.addr %s25, 2
          %s644 = sadd.s32 %s26, %s643
          %s645 = smul.addr %s644, 128
          %s646 = scalar_lea.hbm %s3, %s645
          %s648 = sshll.u32 %s636, 4
          %s649 = int_to_ptr.vmem [resolvable:$true] %s648
          %651 = dma.vmem_to_hbm [thread:$0]  %s649, 128, %s646, %s633
        $region48: #{tpu_custom_call.1} parent=31 // pred_fallthru
          _
      $region32: #{tpu_custom_call.1} parent=5 // pred_fallthru
        _
      %p652 = scmp.le.s32.totalorder 2, %s16
      // Predicated region
      $region49: #{tpu_custom_call.1} parent=5 // pred_check
        %p653 = pneg %p652
      $region50: #{tpu_custom_call.1} parent=5 // pred_check_branch
        %655 = sbr.rel (%p653) target = $region52
      $region51: #{tpu_custom_call.1} parent=5 // pred_region
        %s656 = ssub.s32 %s16, 2
        // Predicated region
        $region53: #{tpu_custom_call.1} parent=51 // pred_check
          %p657 = pneg %p127
        $region54: #{tpu_custom_call.1} parent=51 // pred_check_branch
          %659 = sbr.rel (%p657) target = $region56
        $region55: #{tpu_custom_call.1} parent=51 // pred_region
          %s660 = sand.u32 %s112, 1
          %s661 = scalar_lea.sflag [#allocation5], %s660
          %s662 = sand.u32 %s112, 1
          %s663 = smul.addr %s662, 8
          %s664 = scalar_lea.vmem [#allocation8], %s663
          %665 = dma.done %s661, 128
        $region56: #{tpu_custom_call.1} parent=51 // pred_fallthru
          _
      $region52: #{tpu_custom_call.1} parent=5 // pred_fallthru
        _
    $region6: #{tpu_custom_call.1} parent=1 // loop_footer
      %s20 = sadd.s32 1, %s16
    $region7: #{tpu_custom_call.1} parent=1 // loop_footer_branch
      %15 = sbr.rel target = $region3
    $region8: #{tpu_custom_call.1} parent=1 // loop_exit
      _
    %666 = vsyncpa [#allocation4], 1
    %s667 = scalar_lea.sflag [#allocation4], 1
    %668 = vsyncpa %s667, 1
    %669 = vsyncpa [#allocation7], 1
    %670 = vsyncpa [#allocation5], 1
    %s671 = scalar_lea.sflag [#allocation5], 1
    %672 = vsyncpa %s671, 1

</llo_original>
